<compile_context>
chip_gen: v5e
topology: v5e:2x2
jax: 0.10.0
libtpu: 0.0.40
codegen_flags: <defaults>
</compile_context>

<pallas_src>
import functools

import jax
import jax.numpy as jnp
from jax.experimental import pallas as pl
from jax.experimental.pallas import tpu as pltpu


def _round_up(x, m):
    return ((x + m - 1) // m) * m


def _pad2(x, rows, cols, dtype):
    """Zero-pad a 2-D array up to (rows, cols) in the given dtype."""
    out = jnp.zeros((rows, cols), dtype)
    return out.at[:x.shape[0], :x.shape[1]].set(x.astype(dtype))


def ggnn_kernel(adj_ref, h_ref, rhs_ref, w_ih_ref, b_ih_ref, b_hh_ref,
                w_out_ref, b_out_ref, out_ref, *, matmul_dtype):
    """Single grid step; everything resident in VMEM.

    adj_ref  : [T, NP, NP]          adjacency in native layout, adj[t, dst, src]
    h_ref    : [NP, HP]  (f32)      node features / previous hidden (lane-padded)
    rhs_ref  : [HP, T*MP + 3*HP]    [A_1^T | ... | A_T^T | W_hh_r^T | W_hh_z^T | W_hh_n^T]
    w_ih_ref : [MP, 3*HP]           GRU input weights, per-gate 128-lane slabs (r|z|n)
    b_ih/b_hh: [1, 3*HP]  (f32)
    w_out    : [HP, CP], b_out: [1, CP] (f32)
    out_ref  : [NP, CP]  (f32)
    """
    T = adj_ref.shape[0]
    NP = adj_ref.shape[1]
    HP = h_ref.shape[1]
    MP = w_ih_ref.shape[0]

    h_f32 = h_ref[...]                                 # [NP, HP] f32 (kept for gate math)
    h_mm = h_f32.astype(matmul_dtype)

    # ---- one fused MXU pass over h: per-type messages AND GRU hidden gates --------------
    fused = jnp.dot(h_mm, rhs_ref[...], preferred_element_type=jnp.float32)  # [NP, T*MP+3*HP]
    gh = fused[:, T * MP:] + b_hh_ref[...]             # [NP, 3*HP]  (128-lane-aligned slice)

    # ---- sum over incoming edges of every type, accumulated in f32 vregs ----------------
    # m[v, j] = sum_t sum_u adj[t, v, u] * (A_t @ h_u)[j]
    m = jnp.zeros((NP, MP), jnp.float32)
    for t in range(T):                                 # T is small & static -> unrolled
        b_t = fused[:, t * MP:(t + 1) * MP].astype(matmul_dtype)   # lane-aligned slab
        m = m + jnp.dot(adj_ref[t], b_t, preferred_element_type=jnp.float32)

    # ---- single-step GRU (PyTorch gate order r, z, n); elementwise math in f32 ----------
    gi = jnp.dot(m.astype(matmul_dtype), w_ih_ref[...],
                 preferred_element_type=jnp.float32) + b_ih_ref[...]
    r = jax.nn.sigmoid(gi[:, 0:HP] + gh[:, 0:HP])
    z = jax.nn.sigmoid(gi[:, HP:2 * HP] + gh[:, HP:2 * HP])
    n = jnp.tanh(gi[:, 2 * HP:3 * HP] + r * gh[:, 2 * HP:3 * HP])
    h_new = n + z * (h_f32 - n)                        # == (1-z)*n + z*h, one fewer VPU op

    # ---- output projection: lane-dense store ---------------------------------------------
    out_ref[...] = (jnp.dot(h_new.astype(matmul_dtype), w_out_ref[...],
                            preferred_element_type=jnp.float32)
                    + b_out_ref[...]).astype(out_ref.dtype)


def ggnn_prepare_params(edge_mat, w_ih, w_hh, b_ih, b_hh, w_out, b_out,
                        *, msg_dim, hidden_dim, matmul_dtype=jnp.float32):
    """One-time weight re-layout (cache this across forward calls)."""
    T = edge_mat.shape[0]
    H, M, C = hidden_dim, msg_dim, w_out.shape[0]
    HP, MP, CP = _round_up(H, 128), _round_up(M, 128), _round_up(C, 128)
    f32 = jnp.float32

    # A_t^T stacked along lanes (each type a full 128-lane slab), then W_hh gate slabs.
    A3 = edge_mat.reshape(T, M, H)                                        # A_t = [M, H]
    msg_slabs = [_pad2(A3[t].T, HP, MP, matmul_dtype) for t in range(T)]  # [HP, MP] each
    hh_slabs = [_pad2(w_hh[g * H:(g + 1) * H, :].T, HP, HP, matmul_dtype) for g in range(3)]
    rhs_fused = jnp.concatenate(msg_slabs + hh_slabs, axis=1)             # [HP, T*MP + 3*HP]

    w_ih_cat = jnp.concatenate(
        [_pad2(w_ih[g * H:(g + 1) * H, :].T, MP, HP, matmul_dtype) for g in range(3)], axis=1)
    b_ih_cat = jnp.concatenate(
        [_pad2(b_ih[g * H:(g + 1) * H].reshape(1, H), 1, HP, f32) for g in range(3)], axis=1)
    b_hh_cat = jnp.concatenate(
        [_pad2(b_hh[g * H:(g + 1) * H].reshape(1, H), 1, HP, f32) for g in range(3)], axis=1)

    w_out_p = _pad2(w_out.T, HP, CP, matmul_dtype)                        # [HP, CP]
    b_out_p = _pad2(b_out.reshape(1, C), 1, CP, f32)                      # [1, CP]

    return dict(rhs_fused=rhs_fused, w_ih=w_ih_cat, b_ih=b_ih_cat, b_hh=b_hh_cat,
                w_out=w_out_p, b_out=b_out_p,
                dims=dict(T=T, H=H, M=M, C=C, HP=HP, MP=MP, CP=CP),
                matmul_dtype=matmul_dtype)


def ggnn_prepare_adj(adj, *, matmul_dtype=jnp.float32):
    """Per-graph adjacency packing (cacheable): native [T, N, N], N sublane-padded to 8."""
    T, N, _ = adj.shape
    NP = _round_up(N, 8)
    return jnp.zeros((T, NP, NP), matmul_dtype).at[:, :N, :N].set(adj.astype(matmul_dtype))


def ggnn_apply(params, adj_p, feats):
    d = params["dims"]
    T, C = d["T"], d["C"]
    HP, MP, CP = d["HP"], d["MP"], d["CP"]
    matmul_dtype = params["matmul_dtype"]
    N = feats.shape[0]
    NP = adj_p.shape[1]

    h_pad = _pad2(feats, NP, HP, jnp.float32)                             # [NP, HP] f32

    inputs = (adj_p, h_pad, params["rhs_fused"], params["w_ih"],
              params["b_ih"], params["b_hh"], params["w_out"], params["b_out"])

    # --- cost estimate (hint for the XLA scheduler) ---------------------------------------
    flops = (2 * NP * HP * (T * MP + 3 * HP)     # fused = h @ [msg | hh]
             + 2 * T * NP * NP * MP              # m accumulation over edge types
             + 2 * NP * MP * 3 * HP              # gi
             + 2 * NP * HP * CP)                 # output projection
    bytes_accessed = sum(int(a.size) * a.dtype.itemsize for a in inputs) + NP * CP * 4
    cost = pl.CostEstimate(flops=int(flops), transcendentals=int(3 * NP * HP),
                           bytes_accessed=int(bytes_accessed))

    grid_spec = pl.GridSpec(
        grid=(1,),
        in_specs=[
            pl.BlockSpec((T, NP, NP), lambda i: (0, 0, 0)),               # adjacency (native)
            pl.BlockSpec((NP, HP), lambda i: (0, 0)),                     # h / features
            pl.BlockSpec((HP, T * MP + 3 * HP), lambda i: (0, 0)),        # fused RHS
            pl.BlockSpec((MP, 3 * HP), lambda i: (0, 0)),                 # GRU W_ih slabs
            pl.BlockSpec((1, 3 * HP), lambda i: (0, 0)),                  # b_ih
            pl.BlockSpec((1, 3 * HP), lambda i: (0, 0)),                  # b_hh
            pl.BlockSpec((HP, CP), lambda i: (0, 0)),                     # W_out^T
            pl.BlockSpec((1, CP), lambda i: (0, 0)),                      # b_out
        ],
        out_specs=pl.BlockSpec((NP, CP), lambda i: (0, 0)),
    )

    out_pad = pl.pallas_call(
        functools.partial(ggnn_kernel, matmul_dtype=matmul_dtype),
        out_shape=jax.ShapeDtypeStruct((NP, CP), jnp.float32),
        grid_spec=grid_spec,
        compiler_params=pltpu.CompilerParams(dimension_semantics=("arbitrary",)),
        cost_estimate=cost,
    )(*inputs)

    return out_pad[:N, :C]


def ggnn_forward(adj, feats, edge_mat, w_ih, w_hh, b_ih, b_hh, w_out, b_out,
                 *, matmul_dtype=jnp.float32):
    """adj: [T,N,N], feats: [N,H], edge_mat: [T, M*H] (nn.Embedding weight),
    w_ih: [3H,M], w_hh: [3H,H], b_ih/b_hh: [3H], w_out: [C,H], b_out: [C]."""
    params = ggnn_prepare_params(edge_mat, w_ih, w_hh, b_ih, b_hh, w_out, b_out,
                                 msg_dim=w_ih.shape[1], hidden_dim=feats.shape[1],
                                 matmul_dtype=matmul_dtype)
    adj_p = ggnn_prepare_adj(adj, matmul_dtype=matmul_dtype)
    return ggnn_apply(params, adj_p, feats)


def ggnn_reference(adj, feats, edge_mat, w_ih, w_hh, b_ih, b_hh, w_out, b_out):
    """Pure-JAX reference matching the PyTorch forward."""
    T, N, _ = adj.shape
    H = feats.shape[1]
    M = w_ih.shape[1]
    A3 = edge_mat.reshape(T, M, H)
    # m[v] = sum_t sum_u adj[t,v,u] * (A_t @ h_u)
    m = jnp.einsum('tvu,uh,tmh->vm', adj, feats, A3)
    gi = m @ w_ih.T + b_ih
    gh = feats @ w_hh.T + b_hh
    r = jax.nn.sigmoid(gi[:, 0:H] + gh[:, 0:H])
    z = jax.nn.sigmoid(gi[:, H:2 * H] + gh[:, H:2 * H])
    n = jnp.tanh(gi[:, 2 * H:3 * H] + r * gh[:, 2 * H:3 * H])
    h_new = (1.0 - z) * n + z * feats
    return h_new @ w_out.T + b_out


if __name__ == "__main__":
    # small synthetic graph / module config
    N = 32            # nodes
    E = 96            # edges
    T = 4             # num_edge_type
    HID = 16          # hidden_dim
    MSG = 16          # msg_dim
    C = 8             # num_classes

    key = jax.random.PRNGKey(0)
    keys = jax.random.split(key, 12)

    # graph: random edge list (src, dst, type) -> dense per-type adjacency (adj[t, dst, src])
    src = jax.random.randint(keys[0], (E,), 0, N)
    dst = jax.random.randint(keys[1], (E,), 0, N)
    etype = jax.random.randint(keys[2], (E,), 0, T)
    adj = jnp.zeros((T, N, N), jnp.float32).at[etype, dst, src].add(1.0)

    # node features (also the initial GRU hidden state)
    feats = jax.random.normal(keys[3], (N, HID), jnp.float32)

    # deterministic parameter init (shapes from GGNN.__init__)
    edge_mat = jax.random.normal(keys[4], (T, MSG * HID), jnp.float32) * 0.1  # nn.Embedding weight
    s = 1.0 / jnp.sqrt(jnp.float32(HID))
    w_ih = jax.random.uniform(keys[5], (3 * HID, MSG), jnp.float32, -s, s)    # GRU weight_ih_l0
    w_hh = jax.random.uniform(keys[6], (3 * HID, HID), jnp.float32, -s, s)    # GRU weight_hh_l0
    b_ih = jax.random.uniform(keys[7], (3 * HID,), jnp.float32, -s, s)
    b_hh = jax.random.uniform(keys[8], (3 * HID,), jnp.float32, -s, s)
    w_out = jax.random.uniform(keys[9], (C, HID), jnp.float32, -s, s)         # nn.Linear
    b_out = jax.random.uniform(keys[10], (C,), jnp.float32, -s, s)

    ref = ggnn_reference(adj, feats, edge_mat, w_ih, w_hh, b_ih, b_hh, w_out, b_out)

    # f32 MXU operands: bit-for-bit comparable at tight tolerance
    out_f32 = ggnn_forward(adj, feats, edge_mat, w_ih, w_hh, b_ih, b_hh, w_out, b_out,
                           matmul_dtype=jnp.float32)
    out_f32 = jax.block_until_ready(out_f32)
    assert out_f32.shape == (N, C)
    assert jnp.allclose(out_f32, ref, rtol=1e-3, atol=1e-3), "f32 path mismatch vs reference"

    # bf16 MXU operands (v6e/v7x fast path), f32 accumulation & gate math
    out_bf16 = ggnn_forward(adj, feats, edge_mat, w_ih, w_hh, b_ih, b_hh, w_out, b_out,
                            matmul_dtype=jnp.bfloat16)
    out_bf16 = jax.block_until_ready(out_bf16)
    assert out_bf16.shape == (N, C)
    assert jnp.allclose(out_bf16, ref, rtol=5e-2, atol=5e-2), "bf16 path mismatch vs reference"

    print("KERNEL_OK")
</pallas_src>

<mosaic_0001>
module attributes {stable_mosaic.version = 11 : i64} {
  func.func @ggnn_kernel(%arg0: i32, %arg1: memref<4x32x32xf32, #tpu.memory_space<vmem>>, %arg2: memref<32x128xf32, #tpu.memory_space<vmem>>, %arg3: memref<128x896xf32, #tpu.memory_space<vmem>>, %arg4: memref<128x384xf32, #tpu.memory_space<vmem>>, %arg5: memref<1x384xf32, #tpu.memory_space<vmem>>, %arg6: memref<1x384xf32, #tpu.memory_space<vmem>>, %arg7: memref<128x128xf32, #tpu.memory_space<vmem>>, %arg8: memref<1x128xf32, #tpu.memory_space<vmem>>, %arg9: memref<32x128xf32, #tpu.memory_space<vmem>>) attributes {dimension_semantics = [#tpu.dimension_semantics<arbitrary>], iteration_bounds = array<i64: 1>, scalar_prefetch = 0 : i64, scratch_operands = 0 : i64, tpu.core_type = #tpu.core_type<tc>, window_params = [{pipeline_mode = #tpu.pipeline_mode<synchronous>, transform_indices = @transform_0, window_bounds = array<i64: 4, 32, 32>}, {pipeline_mode = #tpu.pipeline_mode<synchronous>, transform_indices = @transform_1, window_bounds = array<i64: 32, 128>}, {pipeline_mode = #tpu.pipeline_mode<synchronous>, transform_indices = @transform_2, window_bounds = array<i64: 128, 896>}, {pipeline_mode = #tpu.pipeline_mode<synchronous>, transform_indices = @transform_3, window_bounds = array<i64: 128, 384>}, {pipeline_mode = #tpu.pipeline_mode<synchronous>, transform_indices = @transform_4, window_bounds = array<i64: 1, 384>}, {pipeline_mode = #tpu.pipeline_mode<synchronous>, transform_indices = @transform_5, window_bounds = array<i64: 1, 384>}, {pipeline_mode = #tpu.pipeline_mode<synchronous>, transform_indices = @transform_6, window_bounds = array<i64: 128, 128>}, {pipeline_mode = #tpu.pipeline_mode<synchronous>, transform_indices = @transform_7, window_bounds = array<i64: 1, 128>}, {pipeline_mode = #tpu.pipeline_mode<synchronous>, transform_indices = @transform_8, window_bounds = array<i64: 32, 128>}]} {
    %c0 = arith.constant 0 : index
    %c0_0 = arith.constant 0 : index
    %0 = vector.load %arg2[%c0, %c0_0] : memref<32x128xf32, #tpu.memory_space<vmem>>, vector<32x128xf32>
    %c0_1 = arith.constant 0 : index
    %c0_2 = arith.constant 0 : index
    %1 = vector.load %arg3[%c0_1, %c0_2] : memref<128x896xf32, #tpu.memory_space<vmem>>, vector<128x896xf32>
    %cst = arith.constant dense<0.000000e+00> : vector<32x896xf32>
    %2 = tpu.matmul %0, %1, %cst {dimension_numbers = #tpu.dot_dimension_numbers<[1], [0], [0], [1], [0, 0, 1, 1], [], []>} : vector<32x128xf32>, vector<128x896xf32>, vector<32x896xf32> -> vector<32x896xf32>
    %3 = vector.extract_strided_slice %2 {offsets = [0, 512], sizes = [32, 384], strides = [1, 1]} : vector<32x896xf32> to vector<32x384xf32>
    %c0_3 = arith.constant 0 : index
    %c0_4 = arith.constant 0 : index
    %4 = vector.load %arg6[%c0_3, %c0_4] : memref<1x384xf32, #tpu.memory_space<vmem>>, vector<1x384xf32>
    %5 = vector.broadcast %4 : vector<1x384xf32> to vector<32x384xf32>
    %6 = arith.addf %3, %5 : vector<32x384xf32>
    %cst_5 = arith.constant 0.000000e+00 : f32
    %7 = vector.broadcast %cst_5 : f32 to vector<32x128xf32>
    %8 = vector.extract_strided_slice %2 {offsets = [0, 0], sizes = [32, 128], strides = [1, 1]} : vector<32x896xf32> to vector<32x128xf32>
    %c0_6 = arith.constant 0 : index
    %c0_7 = arith.constant 0 : index
    %c0_8 = arith.constant 0 : index
    %9 = vector.load %arg1[%c0_6, %c0_7, %c0_8] : memref<4x32x32xf32, #tpu.memory_space<vmem>>, vector<1x32x32xf32>
    %10 = vector.shape_cast %9 : vector<1x32x32xf32> to vector<32x32xf32>
    %cst_9 = arith.constant dense<0.000000e+00> : vector<32x128xf32>
    %11 = tpu.matmul %10, %8, %cst_9 {dimension_numbers = #tpu.dot_dimension_numbers<[1], [0], [0], [1], [0, 0, 1, 1], [], []>} : vector<32x32xf32>, vector<32x128xf32>, vector<32x128xf32> -> vector<32x128xf32>
    %12 = arith.addf %7, %11 : vector<32x128xf32>
    %13 = vector.extract_strided_slice %2 {offsets = [0, 128], sizes = [32, 128], strides = [1, 1]} : vector<32x896xf32> to vector<32x128xf32>
    %c1 = arith.constant 1 : index
    %c0_10 = arith.constant 0 : index
    %c0_11 = arith.constant 0 : index
    %14 = vector.load %arg1[%c1, %c0_10, %c0_11] : memref<4x32x32xf32, #tpu.memory_space<vmem>>, vector<1x32x32xf32>
    %15 = vector.shape_cast %14 : vector<1x32x32xf32> to vector<32x32xf32>
    %cst_12 = arith.constant dense<0.000000e+00> : vector<32x128xf32>
    %16 = tpu.matmul %15, %13, %cst_12 {dimension_numbers = #tpu.dot_dimension_numbers<[1], [0], [0], [1], [0, 0, 1, 1], [], []>} : vector<32x32xf32>, vector<32x128xf32>, vector<32x128xf32> -> vector<32x128xf32>
    %17 = arith.addf %12, %16 : vector<32x128xf32>
    %18 = vector.extract_strided_slice %2 {offsets = [0, 256], sizes = [32, 128], strides = [1, 1]} : vector<32x896xf32> to vector<32x128xf32>
    %c2 = arith.constant 2 : index
    %c0_13 = arith.constant 0 : index
    %c0_14 = arith.constant 0 : index
    %19 = vector.load %arg1[%c2, %c0_13, %c0_14] : memref<4x32x32xf32, #tpu.memory_space<vmem>>, vector<1x32x32xf32>
    %20 = vector.shape_cast %19 : vector<1x32x32xf32> to vector<32x32xf32>
    %cst_15 = arith.constant dense<0.000000e+00> : vector<32x128xf32>
    %21 = tpu.matmul %20, %18, %cst_15 {dimension_numbers = #tpu.dot_dimension_numbers<[1], [0], [0], [1], [0, 0, 1, 1], [], []>} : vector<32x32xf32>, vector<32x128xf32>, vector<32x128xf32> -> vector<32x128xf32>
    %22 = arith.addf %17, %21 : vector<32x128xf32>
    %23 = vector.extract_strided_slice %2 {offsets = [0, 384], sizes = [32, 128], strides = [1, 1]} : vector<32x896xf32> to vector<32x128xf32>
    %c3 = arith.constant 3 : index
    %c0_16 = arith.constant 0 : index
    %c0_17 = arith.constant 0 : index
    %24 = vector.load %arg1[%c3, %c0_16, %c0_17] : memref<4x32x32xf32, #tpu.memory_space<vmem>>, vector<1x32x32xf32>
    %25 = vector.shape_cast %24 : vector<1x32x32xf32> to vector<32x32xf32>
    %cst_18 = arith.constant dense<0.000000e+00> : vector<32x128xf32>
    %26 = tpu.matmul %25, %23, %cst_18 {dimension_numbers = #tpu.dot_dimension_numbers<[1], [0], [0], [1], [0, 0, 1, 1], [], []>} : vector<32x32xf32>, vector<32x128xf32>, vector<32x128xf32> -> vector<32x128xf32>
    %27 = arith.addf %22, %26 : vector<32x128xf32>
    %c0_19 = arith.constant 0 : index
    %c0_20 = arith.constant 0 : index
    %28 = vector.load %arg4[%c0_19, %c0_20] : memref<128x384xf32, #tpu.memory_space<vmem>>, vector<128x384xf32>
    %cst_21 = arith.constant dense<0.000000e+00> : vector<32x384xf32>
    %29 = tpu.matmul %27, %28, %cst_21 {dimension_numbers = #tpu.dot_dimension_numbers<[1], [0], [0], [1], [0, 0, 1, 1], [], []>} : vector<32x128xf32>, vector<128x384xf32>, vector<32x384xf32> -> vector<32x384xf32>
    %c0_22 = arith.constant 0 : index
    %c0_23 = arith.constant 0 : index
    %30 = vector.load %arg5[%c0_22, %c0_23] : memref<1x384xf32, #tpu.memory_space<vmem>>, vector<1x384xf32>
    %31 = vector.broadcast %30 : vector<1x384xf32> to vector<32x384xf32>
    %32 = arith.addf %29, %31 : vector<32x384xf32>
    %33 = vector.extract_strided_slice %32 {offsets = [0, 0], sizes = [32, 128], strides = [1, 1]} : vector<32x384xf32> to vector<32x128xf32>
    %34 = vector.extract_strided_slice %6 {offsets = [0, 0], sizes = [32, 128], strides = [1, 1]} : vector<32x384xf32> to vector<32x128xf32>
    %35 = arith.addf %33, %34 : vector<32x128xf32>
    %36 = arith.negf %35 : vector<32x128xf32>
    %37 = math.exp %36 : vector<32x128xf32>
    %cst_24 = arith.constant 1.000000e+00 : f32
    %38 = vector.broadcast %cst_24 : f32 to vector<32x128xf32>
    %39 = arith.addf %38, %37 : vector<32x128xf32>
    %40 = arith.divf %38, %39 : vector<32x128xf32>
    %41 = vector.extract_strided_slice %32 {offsets = [0, 128], sizes = [32, 128], strides = [1, 1]} : vector<32x384xf32> to vector<32x128xf32>
    %42 = vector.extract_strided_slice %6 {offsets = [0, 128], sizes = [32, 128], strides = [1, 1]} : vector<32x384xf32> to vector<32x128xf32>
    %43 = arith.addf %41, %42 : vector<32x128xf32>
    %44 = arith.negf %43 : vector<32x128xf32>
    %45 = math.exp %44 : vector<32x128xf32>
    %cst_25 = arith.constant 1.000000e+00 : f32
    %46 = vector.broadcast %cst_25 : f32 to vector<32x128xf32>
    %47 = arith.addf %46, %45 : vector<32x128xf32>
    %48 = arith.divf %46, %47 : vector<32x128xf32>
    %49 = vector.extract_strided_slice %32 {offsets = [0, 256], sizes = [32, 128], strides = [1, 1]} : vector<32x384xf32> to vector<32x128xf32>
    %50 = vector.extract_strided_slice %6 {offsets = [0, 256], sizes = [32, 128], strides = [1, 1]} : vector<32x384xf32> to vector<32x128xf32>
    %51 = arith.mulf %40, %50 : vector<32x128xf32>
    %52 = arith.addf %49, %51 : vector<32x128xf32>
    %53 = math.tanh %52 : vector<32x128xf32>
    %54 = arith.subf %0, %53 : vector<32x128xf32>
    %55 = arith.mulf %48, %54 : vector<32x128xf32>
    %56 = arith.addf %53, %55 : vector<32x128xf32>
    %c0_26 = arith.constant 0 : index
    %c0_27 = arith.constant 0 : index
    %57 = vector.load %arg7[%c0_26, %c0_27] : memref<128x128xf32, #tpu.memory_space<vmem>>, vector<128x128xf32>
    %cst_28 = arith.constant dense<0.000000e+00> : vector<32x128xf32>
    %58 = tpu.matmul %56, %57, %cst_28 {dimension_numbers = #tpu.dot_dimension_numbers<[1], [0], [0], [1], [0, 0, 1, 1], [], []>} : vector<32x128xf32>, vector<128x128xf32>, vector<32x128xf32> -> vector<32x128xf32>
    %c0_29 = arith.constant 0 : index
    %c0_30 = arith.constant 0 : index
    %59 = vector.load %arg8[%c0_29, %c0_30] : memref<1x128xf32, #tpu.memory_space<vmem>>, vector<1x128xf32>
    %60 = vector.broadcast %59 : vector<1x128xf32> to vector<32x128xf32>
    %61 = arith.addf %58, %60 : vector<32x128xf32>
    %c0_31 = arith.constant 0 : index
    %c0_32 = arith.constant 0 : index
    %62 = vector.load %arg9[%c0_31, %c0_32] : memref<32x128xf32, #tpu.memory_space<vmem>>, vector<32x128xf32>
    tpu.vector_store %arg9[%c0_31, %c0_32], %61 {strides = array<i32>} : memref<32x128xf32, #tpu.memory_space<vmem>>, vector<32x128xf32>,
    return
  }
  func.func @transform_0(%arg0: i32) -> (i32, i32, i32) {
    %c0_i32 = arith.constant 0 : i32
    %c0_i32_0 = arith.constant 0 : i32
    %c0_i32_1 = arith.constant 0 : i32
    %c0_i32_2 = arith.constant 0 : i32
    return %c0_i32, %c0_i32_0, %c0_i32_1 : i32, i32, i32
  }
  func.func @transform_1(%arg0: i32) -> (i32, i32) {
    %c0_i32 = arith.constant 0 : i32
    %c0_i32_0 = arith.constant 0 : i32
    %c0_i32_1 = arith.constant 0 : i32
    return %c0_i32, %c0_i32_0 : i32, i32
  }
  func.func @transform_2(%arg0: i32) -> (i32, i32) {
    %c0_i32 = arith.constant 0 : i32
    %c0_i32_0 = arith.constant 0 : i32
    %c0_i32_1 = arith.constant 0 : i32
    return %c0_i32, %c0_i32_0 : i32, i32
  }
  func.func @transform_3(%arg0: i32) -> (i32, i32) {
    %c0_i32 = arith.constant 0 : i32
    %c0_i32_0 = arith.constant 0 : i32
    %c0_i32_1 = arith.constant 0 : i32
    return %c0_i32, %c0_i32_0 : i32, i32
  }
  func.func @transform_4(%arg0: i32) -> (i32, i32) {
    %c0_i32 = arith.constant 0 : i32
    %c0_i32_0 = arith.constant 0 : i32
    %c0_i32_1 = arith.constant 0 : i32
    return %c0_i32, %c0_i32_0 : i32, i32
  }
  func.func @transform_5(%arg0: i32) -> (i32, i32) {
    %c0_i32 = arith.constant 0 : i32
    %c0_i32_0 = arith.constant 0 : i32
    %c0_i32_1 = arith.constant 0 : i32
    return %c0_i32, %c0_i32_0 : i32, i32
  }
  func.func @transform_6(%arg0: i32) -> (i32, i32) {
    %c0_i32 = arith.constant 0 : i32
    %c0_i32_0 = arith.constant 0 : i32
    %c0_i32_1 = arith.constant 0 : i32
    return %c0_i32, %c0_i32_0 : i32, i32
  }
  func.func @transform_7(%arg0: i32) -> (i32, i32) {
    %c0_i32 = arith.constant 0 : i32
    %c0_i32_0 = arith.constant 0 : i32
    %c0_i32_1 = arith.constant 0 : i32
    return %c0_i32, %c0_i32_0 : i32, i32
  }
  func.func @transform_8(%arg0: i32) -> (i32, i32) {
    %c0_i32 = arith.constant 0 : i32
    %c0_i32_0 = arith.constant 0 : i32
    %c0_i32_1 = arith.constant 0 : i32
    return %c0_i32, %c0_i32_0 : i32, i32
  }
}

</mosaic_0001>

<llo_original>
// kernel: tpu_custom_call.1
$region0: #{tpu_custom_call.1}
  #allocation0 [shape = 'u32[]', space=smem, size = 0x4, offset = 0x4, fixed_abs, tag = 'smem constant byte address 0x4 - core index']
  #allocation1 [shape = 'u32[72,128]{1,0:T(1,128)}', space=vmem, size = 0x9000, scoped, tag = 'internal scratch']
  %s0 = inlined_call_operand.hbm [shape: f32[4,32,32], index: 0, kind: input, shape index: {}]
  %s1 = inlined_call_operand.hbm [shape: f32[32,128], index: 1, kind: input, shape index: {}]
  %s2 = inlined_call_operand.hbm [shape: f32[128,896], index: 2, kind: input, shape index: {}]
  %s3 = inlined_call_operand.hbm [shape: f32[128,384], index: 3, kind: input, shape index: {}]
  %s4 = inlined_call_operand.vmem [shape: f32[1,384], index: 4, kind: input, shape index: {}]
  %s5 = inlined_call_operand.hbm [shape: f32[1,384], index: 5, kind: input, shape index: {}]
  %s6 = inlined_call_operand.hbm [shape: f32[128,128], index: 6, kind: input, shape index: {}]
  %s7 = inlined_call_operand.vmem [shape: f32[1,128], index: 7, kind: input, shape index: {}]
  %s8 = inlined_call_operand.hbm [shape: f32[32,128], index: 8, kind: output, shape index: {}]
  %s9 = sld [smem:[#allocation0]]
  $region66: #{tpu_custom_call.1} parent=0
    _
  %s11 = ssub.s32 1, %s9
  %s12 = scalar_select 0, %s11, %s9
  $region1: #{tpu_custom_call.1} parent=0
    #allocation2 [shape = 'u8[65536]{0}', space=vmem, size = 0x10000, scoped, tag = 'input window, operand 0, single buffered']
    #allocation3 [shape = 's32[1]{0}', space=sflag, size = 0x4, scoped, tag = 'scoped memory for tpu_custom_call.1']
    #allocation4 [shape = 's32[1]{0}', space=sflag, size = 0x4, scoped, tag = 'scoped memory for tpu_custom_call.1']
    #allocation5 [shape = 'u8[16384]{0}', space=vmem, size = 0x4000, scoped, tag = 'input window, operand 1, single buffered']
    #allocation6 [shape = 's32[1]{0}', space=sflag, size = 0x4, scoped, tag = 'scoped memory for tpu_custom_call.1']
    #allocation7 [shape = 'u8[458752]{0}', space=vmem, size = 0x70000, scoped, tag = 'input window, operand 2, single buffered']
    #allocation8 [shape = 'u8[196608]{0}', space=vmem, size = 0x30000, scoped, tag = 'input window, operand 3, single buffered']
    #allocation9 [shape = 's32[1]{0}', space=sflag, size = 0x4, scoped, tag = 'scoped memory for tpu_custom_call.1']
    #allocation10 [shape = 'u8[1536]{0}', space=vmem, size = 0x800, scoped, tag = 'input window, operand 5, single buffered']
    #allocation11 [shape = 'u8[65536]{0}', space=vmem, size = 0x10000, scoped, tag = 'input window, operand 6, single buffered']
    #allocation12 [shape = 's32[1]{0}', space=sflag, size = 0x4, scoped, tag = 'scoped memory for tpu_custom_call.1']
    #allocation13 [shape = 'u8[16384]{0}', space=vmem, size = 0x4000, scoped, tag = 'output window, operand 0, single buffered']
    %13 = vsyncpa [#allocation3], 0
    %14 = vsyncpa [#allocation6], 0
    %15 = vsyncpa [#allocation9], 0
    %16 = vsyncpa [#allocation12], 0
    %17 = vsyncpa [#allocation4], 0
    // Predicated region
    $region2: #{tpu_custom_call.1} parent=1 // pred_check
      _
    $region3: #{tpu_custom_call.1} parent=1 // pred_check_branch
      %19 = sbr.rel (0) target = $region5
    $region4: #{tpu_custom_call.1} parent=1 // pred_region
      %21 = vsyncadd [#allocation3], 0
      %s22 = sshll.u32 %s0, 4
      %s23 = int_to_ptr.hbm [resolvable:$true] %s22
      %s24 = sshll.u32 [#allocation2], 4
      %s25 = int_to_ptr.vmem [resolvable:$true] %s24
      %30 = dma.hbm_to_vmem [thread:$0]  %s23, 2048, %s25, [#allocation3], 128, 128, 8
    $region5: #{tpu_custom_call.1} parent=1 // pred_fallthru
      _
    // Predicated region
    $region6: #{tpu_custom_call.1} parent=1 // pred_check
      _
    $region7: #{tpu_custom_call.1} parent=1 // pred_check_branch
      %32 = sbr.rel (0) target = $region9
    $region8: #{tpu_custom_call.1} parent=1 // pred_region
      %34 = vsyncadd [#allocation6], 0
      %s35 = sshll.u32 %s1, 4
      %s36 = int_to_ptr.hbm [resolvable:$true] %s35
      %s37 = sshll.u32 [#allocation5], 4
      %s38 = int_to_ptr.vmem [resolvable:$true] %s37
      %43 = dma.hbm_to_vmem [thread:$0]  %s36, 512, %s38, [#allocation6], 128, 128, 8
    $region9: #{tpu_custom_call.1} parent=1 // pred_fallthru
      _
    // Predicated region
    $region10: #{tpu_custom_call.1} parent=1 // pred_check
      _
    $region11: #{tpu_custom_call.1} parent=1 // pred_check_branch
      %45 = sbr.rel (0) target = $region13
    $region12: #{tpu_custom_call.1} parent=1 // pred_region
      %47 = vsyncadd [#allocation6], 0
      %s48 = sshll.u32 %s2, 4
      %s49 = int_to_ptr.hbm [resolvable:$true] %s48
      %s50 = sshll.u32 [#allocation7], 4
      %s51 = int_to_ptr.vmem [resolvable:$true] %s50
      %56 = dma.hbm_to_vmem [thread:$0]  %s49, 14336, %s51, [#allocation6], 896, 896, 56
    $region13: #{tpu_custom_call.1} parent=1 // pred_fallthru
      _
    // Predicated region
    $region14: #{tpu_custom_call.1} parent=1 // pred_check
      _
    $region15: #{tpu_custom_call.1} parent=1 // pred_check_branch
      %58 = sbr.rel (0) target = $region17
    $region16: #{tpu_custom_call.1} parent=1 // pred_region
      %60 = vsyncadd [#allocation9], 0
      %s61 = sshll.u32 %s3, 4
      %s62 = int_to_ptr.hbm [resolvable:$true] %s61
      %s63 = sshll.u32 [#allocation8], 4
      %s64 = int_to_ptr.vmem [resolvable:$true] %s63
      %69 = dma.hbm_to_vmem [thread:$0]  %s62, 6144, %s64, [#allocation9], 384, 384, 24
    $region17: #{tpu_custom_call.1} parent=1 // pred_fallthru
      _
    // Predicated region
    $region18: #{tpu_custom_call.1} parent=1 // pred_check
      _
    $region19: #{tpu_custom_call.1} parent=1 // pred_check_branch
      %71 = sbr.rel (0) target = $region21
    $region20: #{tpu_custom_call.1} parent=1 // pred_region
      _
    $region21: #{tpu_custom_call.1} parent=1 // pred_fallthru
      _
    // Predicated region
    $region22: #{tpu_custom_call.1} parent=1 // pred_check
      _
    $region23: #{tpu_custom_call.1} parent=1 // pred_check_branch
      %73 = sbr.rel (0) target = $region25
    $region24: #{tpu_custom_call.1} parent=1 // pred_region
      %75 = vsyncadd [#allocation9], 0
      %s77 = sshll.u32 %s5, 4
      %s78 = int_to_ptr.hbm [resolvable:$true] %s77
      %s79 = sshll.u32 [#allocation10], 4
      %s80 = int_to_ptr.vmem [resolvable:$true] %s79
      %82 = dma.hbm_to_vmem [thread:$0]  %s78, 48, %s80, [#allocation9]
    $region25: #{tpu_custom_call.1} parent=1 // pred_fallthru
      _
    // Predicated region
    $region26: #{tpu_custom_call.1} parent=1 // pred_check
      _
    $region27: #{tpu_custom_call.1} parent=1 // pred_check_branch
      %84 = sbr.rel (0) target = $region29
    $region28: #{tpu_custom_call.1} parent=1 // pred_region
      %86 = vsyncadd [#allocation12], 0
      %s87 = sshll.u32 %s6, 4
      %s88 = int_to_ptr.hbm [resolvable:$true] %s87
      %s89 = sshll.u32 [#allocation11], 4
      %s90 = int_to_ptr.vmem [resolvable:$true] %s89
      %95 = dma.hbm_to_vmem [thread:$0]  %s88, 2048, %s90, [#allocation12], 128, 128, 8
    $region29: #{tpu_custom_call.1} parent=1 // pred_fallthru
      _
    // Predicated region
    $region30: #{tpu_custom_call.1} parent=1 // pred_check
      _
    $region31: #{tpu_custom_call.1} parent=1 // pred_check_branch
      %97 = sbr.rel (0) target = $region33
    $region32: #{tpu_custom_call.1} parent=1 // pred_region
      _
    $region33: #{tpu_custom_call.1} parent=1 // pred_fallthru
      _
    // Predicated region
    $region34: #{tpu_custom_call.1} parent=1 // pred_check
      _
    $region35: #{tpu_custom_call.1} parent=1 // pred_check_branch
      %99 = sbr.rel (0) target = $region37
    $region36: #{tpu_custom_call.1} parent=1 // pred_region
      %101 = dma.done [#allocation3], 2048
    $region37: #{tpu_custom_call.1} parent=1 // pred_fallthru
      _
    // Predicated region
    $region38: #{tpu_custom_call.1} parent=1 // pred_check
      _
    $region39: #{tpu_custom_call.1} parent=1 // pred_check_branch
      %103 = sbr.rel (0) target = $region41
    $region40: #{tpu_custom_call.1} parent=1 // pred_region
      %105 = dma.done [#allocation6], 512
    $region41: #{tpu_custom_call.1} parent=1 // pred_fallthru
      _
    // Predicated region
    $region42: #{tpu_custom_call.1} parent=1 // pred_check
      _
    $region43: #{tpu_custom_call.1} parent=1 // pred_check_branch
      %107 = sbr.rel (0) target = $region45
    $region44: #{tpu_custom_call.1} parent=1 // pred_region
      %109 = dma.done [#allocation6], 14336
    $region45: #{tpu_custom_call.1} parent=1 // pred_fallthru
      _
    // Predicated region
    $region46: #{tpu_custom_call.1} parent=1 // pred_check
      _
    $region47: #{tpu_custom_call.1} parent=1 // pred_check_branch
      %111 = sbr.rel (0) target = $region49
    $region48: #{tpu_custom_call.1} parent=1 // pred_region
      %113 = dma.done [#allocation9], 6144
    $region49: #{tpu_custom_call.1} parent=1 // pred_fallthru
      _
    // Predicated region
    $region50: #{tpu_custom_call.1} parent=1 // pred_check
      _
    $region51: #{tpu_custom_call.1} parent=1 // pred_check_branch
      %115 = sbr.rel (0) target = $region53
    $region52: #{tpu_custom_call.1} parent=1 // pred_region
      %117 = dma.done [#allocation9], 48
    $region53: #{tpu_custom_call.1} parent=1 // pred_fallthru
      _
    // Predicated region
    $region54: #{tpu_custom_call.1} parent=1 // pred_check
      _
    $region55: #{tpu_custom_call.1} parent=1 // pred_check_branch
      %119 = sbr.rel (0) target = $region57
    $region56: #{tpu_custom_call.1} parent=1 // pred_region
      %121 = dma.done [#allocation12], 2048
    $region57: #{tpu_custom_call.1} parent=1 // pred_fallthru
      _
    %v122 = vld [vmem:[#allocation5] sm:$0xff]
    %v123 = vld [vmem:[#allocation5 + $0x8] sm:$0xff]
    %v124 = vld [vmem:[#allocation5 + $0x10] sm:$0xff]
    %v125 = vld [vmem:[#allocation5 + $0x18] sm:$0xff]
    %v126 = vld [vmem:[#allocation7] sm:$0xff]
    %v127 = vld [vmem:[#allocation7 + $0x8] sm:$0xff]
    %v128 = vld [vmem:[#allocation7 + $0x10] sm:$0xff]
    %v129 = vld [vmem:[#allocation7 + $0x18] sm:$0xff]
    %v130 = vld [vmem:[#allocation7 + $0x20] sm:$0xff]
    %v131 = vld [vmem:[#allocation7 + $0x28] sm:$0xff]
    %v132 = vld [vmem:[#allocation7 + $0x30] sm:$0xff]
    %v133 = vld [vmem:[#allocation7 + $0x38] sm:$0xff]
    %v134 = vld [vmem:[#allocation7 + $0x40] sm:$0xff]
    %v135 = vld [vmem:[#allocation7 + $0x48] sm:$0xff]
    %v136 = vld [vmem:[#allocation7 + $0x50] sm:$0xff]
    %v137 = vld [vmem:[#allocation7 + $0x58] sm:$0xff]
    %v138 = vld [vmem:[#allocation7 + $0x60] sm:$0xff]
    %v139 = vld [vmem:[#allocation7 + $0x68] sm:$0xff]
    %v140 = vld [vmem:[#allocation7 + $0x70] sm:$0xff]
    %v141 = vld [vmem:[#allocation7 + $0x78] sm:$0xff]
    %v142 = vld [vmem:[#allocation7 + $0x80] sm:$0xff]
    %v143 = vld [vmem:[#allocation7 + $0x88] sm:$0xff]
    %v144 = vld [vmem:[#allocation7 + $0x90] sm:$0xff]
    %v145 = vld [vmem:[#allocation7 + $0x98] sm:$0xff]
    %v146 = vld [vmem:[#allocation7 + $0xa0] sm:$0xff]
    %v147 = vld [vmem:[#allocation7 + $0xa8] sm:$0xff]
    %v148 = vld [vmem:[#allocation7 + $0xb0] sm:$0xff]
    %v149 = vld [vmem:[#allocation7 + $0xb8] sm:$0xff]
    %v150 = vld [vmem:[#allocation7 + $0xc0] sm:$0xff]
    %v151 = vld [vmem:[#allocation7 + $0xc8] sm:$0xff]
    %v152 = vld [vmem:[#allocation7 + $0xd0] sm:$0xff]
    %v153 = vld [vmem:[#allocation7 + $0xd8] sm:$0xff]
    %v154 = vld [vmem:[#allocation7 + $0xe0] sm:$0xff]
    %v155 = vld [vmem:[#allocation7 + $0xe8] sm:$0xff]
    %v156 = vld [vmem:[#allocation7 + $0xf0] sm:$0xff]
    %v157 = vld [vmem:[#allocation7 + $0xf8] sm:$0xff]
    %v158 = vld [vmem:[#allocation7 + $0x100] sm:$0xff]
    %v159 = vld [vmem:[#allocation7 + $0x108] sm:$0xff]
    %v160 = vld [vmem:[#allocation7 + $0x110] sm:$0xff]
    %v161 = vld [vmem:[#allocation7 + $0x118] sm:$0xff]
    %v162 = vld [vmem:[#allocation7 + $0x120] sm:$0xff]
    %v163 = vld [vmem:[#allocation7 + $0x128] sm:$0xff]
    %v164 = vld [vmem:[#allocation7 + $0x130] sm:$0xff]
    %v165 = vld [vmem:[#allocation7 + $0x138] sm:$0xff]
    %v166 = vld [vmem:[#allocation7 + $0x140] sm:$0xff]
    %v167 = vld [vmem:[#allocation7 + $0x148] sm:$0xff]
    %v168 = vld [vmem:[#allocation7 + $0x150] sm:$0xff]
    %v169 = vld [vmem:[#allocation7 + $0x158] sm:$0xff]
    %v170 = vld [vmem:[#allocation7 + $0x160] sm:$0xff]
    %v171 = vld [vmem:[#allocation7 + $0x168] sm:$0xff]
    %v172 = vld [vmem:[#allocation7 + $0x170] sm:$0xff]
    %v173 = vld [vmem:[#allocation7 + $0x178] sm:$0xff]
    %v174 = vld [vmem:[#allocation7 + $0x180] sm:$0xff]
    %v175 = vld [vmem:[#allocation7 + $0x188] sm:$0xff]
    %v176 = vld [vmem:[#allocation7 + $0x190] sm:$0xff]
    %v177 = vld [vmem:[#allocation7 + $0x198] sm:$0xff]
    %v178 = vld [vmem:[#allocation7 + $0x1a0] sm:$0xff]
    %v179 = vld [vmem:[#allocation7 + $0x1a8] sm:$0xff]
    %v180 = vld [vmem:[#allocation7 + $0x1b0] sm:$0xff]
    %v181 = vld [vmem:[#allocation7 + $0x1b8] sm:$0xff]
    %v182 = vld [vmem:[#allocation7 + $0x1c0] sm:$0xff]
    %v183 = vld [vmem:[#allocation7 + $0x1c8] sm:$0xff]
    %v184 = vld [vmem:[#allocation7 + $0x1d0] sm:$0xff]
    %v185 = vld [vmem:[#allocation7 + $0x1d8] sm:$0xff]
    %v186 = vld [vmem:[#allocation7 + $0x1e0] sm:$0xff]
    %v187 = vld [vmem:[#allocation7 + $0x1e8] sm:$0xff]
    %v188 = vld [vmem:[#allocation7 + $0x1f0] sm:$0xff]
    %v189 = vld [vmem:[#allocation7 + $0x1f8] sm:$0xff]
    %v190 = vld [vmem:[#allocation7 + $0x200] sm:$0xff]
    %v191 = vld [vmem:[#allocation7 + $0x208] sm:$0xff]
    %v192 = vld [vmem:[#allocation7 + $0x210] sm:$0xff]
    %v193 = vld [vmem:[#allocation7 + $0x218] sm:$0xff]
    %v194 = vld [vmem:[#allocation7 + $0x220] sm:$0xff]
    %v195 = vld [vmem:[#allocation7 + $0x228] sm:$0xff]
    %v196 = vld [vmem:[#allocation7 + $0x230] sm:$0xff]
    %v197 = vld [vmem:[#allocation7 + $0x238] sm:$0xff]
    %v198 = vld [vmem:[#allocation7 + $0x240] sm:$0xff]
    %v199 = vld [vmem:[#allocation7 + $0x248] sm:$0xff]
    %v200 = vld [vmem:[#allocation7 + $0x250] sm:$0xff]
    %v201 = vld [vmem:[#allocation7 + $0x258] sm:$0xff]
    %v202 = vld [vmem:[#allocation7 + $0x260] sm:$0xff]
    %v203 = vld [vmem:[#allocation7 + $0x268] sm:$0xff]
    %v204 = vld [vmem:[#allocation7 + $0x270] sm:$0xff]
    %v205 = vld [vmem:[#allocation7 + $0x278] sm:$0xff]
    %v206 = vld [vmem:[#allocation7 + $0x280] sm:$0xff]
    %v207 = vld [vmem:[#allocation7 + $0x288] sm:$0xff]
    %v208 = vld [vmem:[#allocation7 + $0x290] sm:$0xff]
    %v209 = vld [vmem:[#allocation7 + $0x298] sm:$0xff]
    %v210 = vld [vmem:[#allocation7 + $0x2a0] sm:$0xff]
    %v211 = vld [vmem:[#allocation7 + $0x2a8] sm:$0xff]
    %v212 = vld [vmem:[#allocation7 + $0x2b0] sm:$0xff]
    %v213 = vld [vmem:[#allocation7 + $0x2b8] sm:$0xff]
    %v214 = vld [vmem:[#allocation7 + $0x2c0] sm:$0xff]
    %v215 = vld [vmem:[#allocation7 + $0x2c8] sm:$0xff]
    %v216 = vld [vmem:[#allocation7 + $0x2d0] sm:$0xff]
    %v217 = vld [vmem:[#allocation7 + $0x2d8] sm:$0xff]
    %v218 = vld [vmem:[#allocation7 + $0x2e0] sm:$0xff]
    %v219 = vld [vmem:[#allocation7 + $0x2e8] sm:$0xff]
    %v220 = vld [vmem:[#allocation7 + $0x2f0] sm:$0xff]
    %v221 = vld [vmem:[#allocation7 + $0x2f8] sm:$0xff]
    %v222 = vld [vmem:[#allocation7 + $0x300] sm:$0xff]
    %v223 = vld [vmem:[#allocation7 + $0x308] sm:$0xff]
    %v224 = vld [vmem:[#allocation7 + $0x310] sm:$0xff]
    %v225 = vld [vmem:[#allocation7 + $0x318] sm:$0xff]
    %v226 = vld [vmem:[#allocation7 + $0x320] sm:$0xff]
    %v227 = vld [vmem:[#allocation7 + $0x328] sm:$0xff]
    %v228 = vld [vmem:[#allocation7 + $0x330] sm:$0xff]
    %v229 = vld [vmem:[#allocation7 + $0x338] sm:$0xff]
    %v230 = vld [vmem:[#allocation7 + $0x340] sm:$0xff]
    %v231 = vld [vmem:[#allocation7 + $0x348] sm:$0xff]
    %v232 = vld [vmem:[#allocation7 + $0x350] sm:$0xff]
    %v233 = vld [vmem:[#allocation7 + $0x358] sm:$0xff]
    %v234 = vld [vmem:[#allocation7 + $0x360] sm:$0xff]
    %v235 = vld [vmem:[#allocation7 + $0x368] sm:$0xff]
    %v236 = vld [vmem:[#allocation7 + $0x370] sm:$0xff]
    %v237 = vld [vmem:[#allocation7 + $0x378] sm:$0xff]
    %238 = vmatpush.msra.mxu0 %v231
    %239 = vmatpush.msra.mxu0 %v224
    %240 = vmatpush.msra.mxu0 %v217
    %241 = vmatpush.msra.mxu0 %v210
    %242 = vmatpush.msra.mxu0 %v203
    %243 = vmatpush.msra.mxu0 %v196
    %244 = vmatpush.msra.mxu0 %v189
    %245 = vmatpush.msra.mxu0 %v182
    %246 = vmatpush.msra.mxu0 %v175
    %247 = vmatpush.msra.mxu0 %v168
    %248 = vmatpush.msra.mxu0 %v161
    %249 = vmatpush.msra.mxu0 %v154
    %250 = vmatpush.msra.mxu0 %v147
    %251 = vmatpush.msra.mxu0 %v140
    %252 = vmatpush.msra.mxu0 %v133
    %253 = vmatpush.msra.mxu0 %v126
    %254 = vmatmul.f32.gmra.mxu0 %v122
    %v255 = vpop.f32.mrf.mxu0
    %v256 = vadd.f32 0.0, %v255
    %257 = vmatmul.f32.gmra.mxu0 %v123
    %v258 = vpop.f32.mrf.mxu0
    %v259 = vadd.f32 0.0, %v258
    %260 = vmatmul.f32.gmra.mxu0 %v124
    %v261 = vpop.f32.mrf.mxu0
    %v262 = vadd.f32 0.0, %v261
    %263 = vmatmul.f32.gmra.mxu0 %v125
    %v264 = vpop.f32.mrf.mxu0
    %v265 = vadd.f32 0.0, %v264
    %266 = vdwg.mxu0
    %267 = vmatpush.msra.mxu0 %v232
    %268 = vmatpush.msra.mxu0 %v225
    %269 = vmatpush.msra.mxu0 %v218
    %270 = vmatpush.msra.mxu0 %v211
    %271 = vmatpush.msra.mxu0 %v204
    %272 = vmatpush.msra.mxu0 %v197
    %273 = vmatpush.msra.mxu0 %v190
    %274 = vmatpush.msra.mxu0 %v183
    %275 = vmatpush.msra.mxu0 %v176
    %276 = vmatpush.msra.mxu0 %v169
    %277 = vmatpush.msra.mxu0 %v162
    %278 = vmatpush.msra.mxu0 %v155
    %279 = vmatpush.msra.mxu0 %v148
    %280 = vmatpush.msra.mxu0 %v141
    %281 = vmatpush.msra.mxu0 %v134
    %282 = vmatpush.msra.mxu0 %v127
    %283 = vmatmul.f32.gmra.mxu0 %v122
    %v284 = vpop.f32.mrf.mxu0
    %v285 = vadd.f32 0.0, %v284
    %286 = vmatmul.f32.gmra.mxu0 %v123
    %v287 = vpop.f32.mrf.mxu0
    %v288 = vadd.f32 0.0, %v287
    %289 = vmatmul.f32.gmra.mxu0 %v124
    %v290 = vpop.f32.mrf.mxu0
    %v291 = vadd.f32 0.0, %v290
    %292 = vmatmul.f32.gmra.mxu0 %v125
    %v293 = vpop.f32.mrf.mxu0
    %v294 = vadd.f32 0.0, %v293
    %295 = vdwg.mxu0
    %296 = vmatpush.msra.mxu0 %v233
    %297 = vmatpush.msra.mxu0 %v226
    %298 = vmatpush.msra.mxu0 %v219
    %299 = vmatpush.msra.mxu0 %v212
    %300 = vmatpush.msra.mxu0 %v205
    %301 = vmatpush.msra.mxu0 %v198
    %302 = vmatpush.msra.mxu0 %v191
    %303 = vmatpush.msra.mxu0 %v184
    %304 = vmatpush.msra.mxu0 %v177
    %305 = vmatpush.msra.mxu0 %v170
    %306 = vmatpush.msra.mxu0 %v163
    %307 = vmatpush.msra.mxu0 %v156
    %308 = vmatpush.msra.mxu0 %v149
    %309 = vmatpush.msra.mxu0 %v142
    %310 = vmatpush.msra.mxu0 %v135
    %311 = vmatpush.msra.mxu0 %v128
    %312 = vmatmul.f32.gmra.mxu0 %v122
    %v313 = vpop.f32.mrf.mxu0
    %v314 = vadd.f32 0.0, %v313
    %315 = vmatmul.f32.gmra.mxu0 %v123
    %v316 = vpop.f32.mrf.mxu0
    %v317 = vadd.f32 0.0, %v316
    %318 = vmatmul.f32.gmra.mxu0 %v124
    %v319 = vpop.f32.mrf.mxu0
    %v320 = vadd.f32 0.0, %v319
    %321 = vmatmul.f32.gmra.mxu0 %v125
    %v322 = vpop.f32.mrf.mxu0
    %v323 = vadd.f32 0.0, %v322
    %324 = vdwg.mxu0
    %325 = vmatpush.msra.mxu0 %v234
    %326 = vmatpush.msra.mxu0 %v227
    %327 = vmatpush.msra.mxu0 %v220
    %328 = vmatpush.msra.mxu0 %v213
    %329 = vmatpush.msra.mxu0 %v206
    %330 = vmatpush.msra.mxu0 %v199
    %331 = vmatpush.msra.mxu0 %v192
    %332 = vmatpush.msra.mxu0 %v185
    %333 = vmatpush.msra.mxu0 %v178
    %334 = vmatpush.msra.mxu0 %v171
    %335 = vmatpush.msra.mxu0 %v164
    %336 = vmatpush.msra.mxu0 %v157
    %337 = vmatpush.msra.mxu0 %v150
    %338 = vmatpush.msra.mxu0 %v143
    %339 = vmatpush.msra.mxu0 %v136
    %340 = vmatpush.msra.mxu0 %v129
    %341 = vmatmul.f32.gmra.mxu0 %v122
    %v342 = vpop.f32.mrf.mxu0
    %v343 = vadd.f32 0.0, %v342
    %344 = vmatmul.f32.gmra.mxu0 %v123
    %v345 = vpop.f32.mrf.mxu0
    %v346 = vadd.f32 0.0, %v345
    %347 = vmatmul.f32.gmra.mxu0 %v124
    %v348 = vpop.f32.mrf.mxu0
    %v349 = vadd.f32 0.0, %v348
    %350 = vmatmul.f32.gmra.mxu0 %v125
    %v351 = vpop.f32.mrf.mxu0
    %v352 = vadd.f32 0.0, %v351
    %353 = vdwg.mxu0
    %354 = vmatpush.msra.mxu0 %v235
    %355 = vmatpush.msra.mxu0 %v228
    %356 = vmatpush.msra.mxu0 %v221
    %357 = vmatpush.msra.mxu0 %v214
    %358 = vmatpush.msra.mxu0 %v207
    %359 = vmatpush.msra.mxu0 %v200
    %360 = vmatpush.msra.mxu0 %v193
    %361 = vmatpush.msra.mxu0 %v186
    %362 = vmatpush.msra.mxu0 %v179
    %363 = vmatpush.msra.mxu0 %v172
    %364 = vmatpush.msra.mxu0 %v165
    %365 = vmatpush.msra.mxu0 %v158
    %366 = vmatpush.msra.mxu0 %v151
    %367 = vmatpush.msra.mxu0 %v144
    %368 = vmatpush.msra.mxu0 %v137
    %369 = vmatpush.msra.mxu0 %v130
    %370 = vmatmul.f32.gmra.mxu0 %v122
    %v371 = vpop.f32.mrf.mxu0
    %v372 = vadd.f32 0.0, %v371
    %373 = vmatmul.f32.gmra.mxu0 %v123
    %v374 = vpop.f32.mrf.mxu0
    %v375 = vadd.f32 0.0, %v374
    %376 = vmatmul.f32.gmra.mxu0 %v124
    %v377 = vpop.f32.mrf.mxu0
    %v378 = vadd.f32 0.0, %v377
    %379 = vmatmul.f32.gmra.mxu0 %v125
    %v380 = vpop.f32.mrf.mxu0
    %v381 = vadd.f32 0.0, %v380
    %382 = vdwg.mxu0
    %383 = vmatpush.msra.mxu0 %v236
    %384 = vmatpush.msra.mxu0 %v229
    %385 = vmatpush.msra.mxu0 %v222
    %386 = vmatpush.msra.mxu0 %v215
    %387 = vmatpush.msra.mxu0 %v208
    %388 = vmatpush.msra.mxu0 %v201
    %389 = vmatpush.msra.mxu0 %v194
    %390 = vmatpush.msra.mxu0 %v187
    %391 = vmatpush.msra.mxu0 %v180
    %392 = vmatpush.msra.mxu0 %v173
    %393 = vmatpush.msra.mxu0 %v166
    %394 = vmatpush.msra.mxu0 %v159
    %395 = vmatpush.msra.mxu0 %v152
    %396 = vmatpush.msra.mxu0 %v145
    %397 = vmatpush.msra.mxu0 %v138
    %398 = vmatpush.msra.mxu0 %v131
    %399 = vmatmul.f32.gmra.mxu0 %v122
    %v400 = vpop.f32.mrf.mxu0
    %v401 = vadd.f32 0.0, %v400
    %402 = vmatmul.f32.gmra.mxu0 %v123
    %v403 = vpop.f32.mrf.mxu0
    %v404 = vadd.f32 0.0, %v403
    %405 = vmatmul.f32.gmra.mxu0 %v124
    %v406 = vpop.f32.mrf.mxu0
    %v407 = vadd.f32 0.0, %v406
    %408 = vmatmul.f32.gmra.mxu0 %v125
    %v409 = vpop.f32.mrf.mxu0
    %v410 = vadd.f32 0.0, %v409
    %411 = vdwg.mxu0
    %412 = vmatpush.msra.mxu0 %v237
    %413 = vmatpush.msra.mxu0 %v230
    %414 = vmatpush.msra.mxu0 %v223
    %415 = vmatpush.msra.mxu0 %v216
    %416 = vmatpush.msra.mxu0 %v209
    %417 = vmatpush.msra.mxu0 %v202
    %418 = vmatpush.msra.mxu0 %v195
    %419 = vmatpush.msra.mxu0 %v188
    %420 = vmatpush.msra.mxu0 %v181
    %421 = vmatpush.msra.mxu0 %v174
    %422 = vmatpush.msra.mxu0 %v167
    %423 = vmatpush.msra.mxu0 %v160
    %424 = vmatpush.msra.mxu0 %v153
    %425 = vmatpush.msra.mxu0 %v146
    %426 = vmatpush.msra.mxu0 %v139
    %427 = vmatpush.msra.mxu0 %v132
    %428 = vmatmul.f32.gmra.mxu0 %v122
    %v429 = vpop.f32.mrf.mxu0
    %v430 = vadd.f32 0.0, %v429
    %431 = vmatmul.f32.gmra.mxu0 %v123
    %v432 = vpop.f32.mrf.mxu0
    %v433 = vadd.f32 0.0, %v432
    %434 = vmatmul.f32.gmra.mxu0 %v124
    %v435 = vpop.f32.mrf.mxu0
    %v436 = vadd.f32 0.0, %v435
    %437 = vmatmul.f32.gmra.mxu0 %v125
    %v438 = vpop.f32.mrf.mxu0
    %v439 = vadd.f32 0.0, %v438
    %440 = vdwg.mxu0
    %v441 = vld [vmem:[#allocation10] sm:$0x7]
    %v443 = vperm.slane %v441, 0
    %v444 = vperm.slane %v441, 1
    %v445 = vperm.slane %v441, 2
    %v449 = vadd.f32 %v372, %v443
    %v450 = vadd.f32 %v401, %v444
    %v451 = vadd.f32 %v430, %v445
    %v452 = vadd.f32 %v375, %v443
    %v453 = vadd.f32 %v404, %v444
    %v454 = vadd.f32 %v433, %v445
    %v455 = vadd.f32 %v378, %v443
    %v456 = vadd.f32 %v407, %v444
    %v457 = vadd.f32 %v436, %v445
    %v458 = vadd.f32 %v381, %v443
    %v459 = vadd.f32 %v410, %v444
    %v460 = vadd.f32 %v439, %v445
    %v461 = vld [vmem:[#allocation2] sm:$0xff]
    %v462 = vld [vmem:[#allocation2 + $0x8] sm:$0xff]
    %v463 = vld [vmem:[#allocation2 + $0x10] sm:$0xff]
    %v464 = vld [vmem:[#allocation2 + $0x18] sm:$0xff]
    %s465 = scalar_lea.vmem [#allocation2], 32
    %v466 = vld [vmem:[%s465] sm:$0xff]
    %v467 = vld [vmem:[%s465 + $0x8] sm:$0xff]
    %v468 = vld [vmem:[%s465 + $0x10] sm:$0xff]
    %v469 = vld [vmem:[%s465 + $0x18] sm:$0xff]
    %vm470 = vcmask 261120
    %v472 = vsel %vm470, %v466, 0
    %v475 = vsel %vm470, %v467, 0
    %v478 = vsel %vm470, %v468, 0
    %v481 = vsel %vm470, %v469, 0
    %483 = vmatpush.msra.mxu0 0.0
    %484 = vmatpush.msra.mxu0 0.0
    %485 = vmatpush.msra.mxu0 0.0
    %486 = vmatpush.msra.mxu0 0.0
    %487 = vmatpush.msra.mxu0 0.0
    %488 = vmatpush.msra.mxu0 0.0
    %489 = vmatpush.msra.mxu0 0.0
    %490 = vmatpush.msra.mxu0 0.0
    %491 = vmatpush.msra.mxu0 0.0
    %492 = vmatpush.msra.mxu0 0.0
    %493 = vmatpush.msra.mxu0 0.0
    %494 = vmatpush.msra.mxu0 0.0
    %495 = vmatpush.msra.mxu0 %v294
    %496 = vmatpush.msra.mxu0 %v291
    %497 = vmatpush.msra.mxu0 %v288
    %498 = vmatpush.msra.mxu0 %v285
    %499 = vmatmul.f32.gmra.mxu0 %v472
    %v500 = vpop.f32.mrf.mxu0
    %v501 = vadd.f32 0.0, %v500
    %502 = vmatmul.f32.gmra.mxu0 %v475
    %v503 = vpop.f32.mrf.mxu0
    %v504 = vadd.f32 0.0, %v503
    %505 = vmatmul.f32.gmra.mxu0 %v478
    %v506 = vpop.f32.mrf.mxu0
    %v507 = vadd.f32 0.0, %v506
    %508 = vmatmul.f32.gmra.mxu0 %v481
    %v509 = vpop.f32.mrf.mxu0
    %v510 = vadd.f32 0.0, %v509
    %511 = vdwg.mxu0
    %v513 = vsel %vm470, %v461, 0
    %v516 = vsel %vm470, %v462, 0
    %v519 = vsel %vm470, %v463, 0
    %v522 = vsel %vm470, %v464, 0
    %524 = vmatpush.msra.mxu0 0.0
    %525 = vmatpush.msra.mxu0 0.0
    %526 = vmatpush.msra.mxu0 0.0
    %527 = vmatpush.msra.mxu0 0.0
    %528 = vmatpush.msra.mxu0 0.0
    %529 = vmatpush.msra.mxu0 0.0
    %530 = vmatpush.msra.mxu0 0.0
    %531 = vmatpush.msra.mxu0 0.0
    %532 = vmatpush.msra.mxu0 0.0
    %533 = vmatpush.msra.mxu0 0.0
    %534 = vmatpush.msra.mxu0 0.0
    %535 = vmatpush.msra.mxu0 0.0
    %536 = vmatpush.msra.mxu0 %v265
    %537 = vmatpush.msra.mxu0 %v262
    %538 = vmatpush.msra.mxu0 %v259
    %539 = vmatpush.msra.mxu0 %v256
    %540 = vmatmul.f32.gmra.mxu0 %v513
    %v541 = vpop.f32.mrf.mxu0
    %v542 = vadd.f32 %v501, %v541
    %543 = vmatmul.f32.gmra.mxu0 %v516
    %v544 = vpop.f32.mrf.mxu0
    %v545 = vadd.f32 %v504, %v544
    %546 = vmatmul.f32.gmra.mxu0 %v519
    %v547 = vpop.f32.mrf.mxu0
    %v548 = vadd.f32 %v507, %v547
    %549 = vmatmul.f32.gmra.mxu0 %v522
    %v550 = vpop.f32.mrf.mxu0
    %v551 = vadd.f32 %v510, %v550
    %552 = vdwg.mxu0
    %s553 = scalar_lea.vmem [#allocation2], 64
    %v554 = vld [vmem:[%s553] sm:$0xff]
    %v555 = vld [vmem:[%s553 + $0x8] sm:$0xff]
    %v556 = vld [vmem:[%s553 + $0x10] sm:$0xff]
    %v557 = vld [vmem:[%s553 + $0x18] sm:$0xff]
    %v559 = vsel %vm470, %v554, 0
    %v562 = vsel %vm470, %v555, 0
    %v565 = vsel %vm470, %v556, 0
    %v568 = vsel %vm470, %v557, 0
    %570 = vmatpush.msra.mxu0 0.0
    %571 = vmatpush.msra.mxu0 0.0
    %572 = vmatpush.msra.mxu0 0.0
    %573 = vmatpush.msra.mxu0 0.0
    %574 = vmatpush.msra.mxu0 0.0
    %575 = vmatpush.msra.mxu0 0.0
    %576 = vmatpush.msra.mxu0 0.0
    %577 = vmatpush.msra.mxu0 0.0
    %578 = vmatpush.msra.mxu0 0.0
    %579 = vmatpush.msra.mxu0 0.0
    %580 = vmatpush.msra.mxu0 0.0
    %581 = vmatpush.msra.mxu0 0.0
    %582 = vmatpush.msra.mxu0 %v323
    %583 = vmatpush.msra.mxu0 %v320
    %584 = vmatpush.msra.mxu0 %v317
    %585 = vmatpush.msra.mxu0 %v314
    %586 = vmatmul.f32.gmra.mxu0 %v559
    %v587 = vpop.f32.mrf.mxu0
    %v588 = vadd.f32 0.0, %v587
    %589 = vmatmul.f32.gmra.mxu0 %v562
    %v590 = vpop.f32.mrf.mxu0
    %v591 = vadd.f32 0.0, %v590
    %592 = vmatmul.f32.gmra.mxu0 %v565
    %v593 = vpop.f32.mrf.mxu0
    %v594 = vadd.f32 0.0, %v593
    %595 = vmatmul.f32.gmra.mxu0 %v568
    %v596 = vpop.f32.mrf.mxu0
    %v597 = vadd.f32 0.0, %v596
    %598 = vdwg.mxu0
    %v599 = vadd.f32 %v542, %v588
    %v600 = vadd.f32 %v545, %v591
    %v601 = vadd.f32 %v548, %v594
    %v602 = vadd.f32 %v551, %v597
    %s603 = scalar_lea.vmem [#allocation2], 96
    %v604 = vld [vmem:[%s603] sm:$0xff]
    %v605 = vld [vmem:[%s603 + $0x8] sm:$0xff]
    %v606 = vld [vmem:[%s603 + $0x10] sm:$0xff]
    %v607 = vld [vmem:[%s603 + $0x18] sm:$0xff]
    %v609 = vsel %vm470, %v604, 0
    %v612 = vsel %vm470, %v605, 0
    %v615 = vsel %vm470, %v606, 0
    %v618 = vsel %vm470, %v607, 0
    %620 = vmatpush.msra.mxu0 0.0
    %621 = vmatpush.msra.mxu0 0.0
    %622 = vmatpush.msra.mxu0 0.0
    %623 = vmatpush.msra.mxu0 0.0
    %624 = vmatpush.msra.mxu0 0.0
    %625 = vmatpush.msra.mxu0 0.0
    %626 = vmatpush.msra.mxu0 0.0
    %627 = vmatpush.msra.mxu0 0.0
    %628 = vmatpush.msra.mxu0 0.0
    %629 = vmatpush.msra.mxu0 0.0
    %630 = vmatpush.msra.mxu0 0.0
    %631 = vmatpush.msra.mxu0 0.0
    %632 = vmatpush.msra.mxu0 %v352
    %633 = vmatpush.msra.mxu0 %v349
    %634 = vmatpush.msra.mxu0 %v346
    %635 = vmatpush.msra.mxu0 %v343
    %636 = vmatmul.f32.gmra.mxu0 %v609
    %v637 = vpop.f32.mrf.mxu0
    %v638 = vadd.f32 0.0, %v637
    %639 = vmatmul.f32.gmra.mxu0 %v612
    %v640 = vpop.f32.mrf.mxu0
    %v641 = vadd.f32 0.0, %v640
    %642 = vmatmul.f32.gmra.mxu0 %v615
    %v643 = vpop.f32.mrf.mxu0
    %v644 = vadd.f32 0.0, %v643
    %645 = vmatmul.f32.gmra.mxu0 %v618
    %v646 = vpop.f32.mrf.mxu0
    %v647 = vadd.f32 0.0, %v646
    %648 = vdwg.mxu0
    %v649 = vadd.f32 %v599, %v638
    %v650 = vadd.f32 %v600, %v641
    %v651 = vadd.f32 %v601, %v644
    %v652 = vadd.f32 %v602, %v647
    %v653 = vld [vmem:[#allocation8] sm:$0xff]
    %v654 = vld [vmem:[#allocation8 + $0x8] sm:$0xff]
    %v655 = vld [vmem:[#allocation8 + $0x10] sm:$0xff]
    %v656 = vld [vmem:[#allocation8 + $0x18] sm:$0xff]
    %v657 = vld [vmem:[#allocation8 + $0x20] sm:$0xff]
    %v658 = vld [vmem:[#allocation8 + $0x28] sm:$0xff]
    %v659 = vld [vmem:[#allocation8 + $0x30] sm:$0xff]
    %v660 = vld [vmem:[#allocation8 + $0x38] sm:$0xff]
    %v661 = vld [vmem:[#allocation8 + $0x40] sm:$0xff]
    %v662 = vld [vmem:[#allocation8 + $0x48] sm:$0xff]
    %v663 = vld [vmem:[#allocation8 + $0x50] sm:$0xff]
    %v664 = vld [vmem:[#allocation8 + $0x58] sm:$0xff]
    %v665 = vld [vmem:[#allocation8 + $0x60] sm:$0xff]
    %v666 = vld [vmem:[#allocation8 + $0x68] sm:$0xff]
    %v667 = vld [vmem:[#allocation8 + $0x70] sm:$0xff]
    %v668 = vld [vmem:[#allocation8 + $0x78] sm:$0xff]
    %v669 = vld [vmem:[#allocation8 + $0x80] sm:$0xff]
    %v670 = vld [vmem:[#allocation8 + $0x88] sm:$0xff]
    %v671 = vld [vmem:[#allocation8 + $0x90] sm:$0xff]
    %v672 = vld [vmem:[#allocation8 + $0x98] sm:$0xff]
    %v673 = vld [vmem:[#allocation8 + $0xa0] sm:$0xff]
    %v674 = vld [vmem:[#allocation8 + $0xa8] sm:$0xff]
    %v675 = vld [vmem:[#allocation8 + $0xb0] sm:$0xff]
    %v676 = vld [vmem:[#allocation8 + $0xb8] sm:$0xff]
    %v677 = vld [vmem:[#allocation8 + $0xc0] sm:$0xff]
    %v678 = vld [vmem:[#allocation8 + $0xc8] sm:$0xff]
    %v679 = vld [vmem:[#allocation8 + $0xd0] sm:$0xff]
    %v680 = vld [vmem:[#allocation8 + $0xd8] sm:$0xff]
    %v681 = vld [vmem:[#allocation8 + $0xe0] sm:$0xff]
    %v682 = vld [vmem:[#allocation8 + $0xe8] sm:$0xff]
    %v683 = vld [vmem:[#allocation8 + $0xf0] sm:$0xff]
    %v684 = vld [vmem:[#allocation8 + $0xf8] sm:$0xff]
    %v685 = vld [vmem:[#allocation8 + $0x100] sm:$0xff]
    %v686 = vld [vmem:[#allocation8 + $0x108] sm:$0xff]
    %v687 = vld [vmem:[#allocation8 + $0x110] sm:$0xff]
    %v688 = vld [vmem:[#allocation8 + $0x118] sm:$0xff]
    %v689 = vld [vmem:[#allocation8 + $0x120] sm:$0xff]
    %v690 = vld [vmem:[#allocation8 + $0x128] sm:$0xff]
    %v691 = vld [vmem:[#allocation8 + $0x130] sm:$0xff]
    %v692 = vld [vmem:[#allocation8 + $0x138] sm:$0xff]
    %v693 = vld [vmem:[#allocation8 + $0x140] sm:$0xff]
    %v694 = vld [vmem:[#allocation8 + $0x148] sm:$0xff]
    %v695 = vld [vmem:[#allocation8 + $0x150] sm:$0xff]
    %v696 = vld [vmem:[#allocation8 + $0x158] sm:$0xff]
    %v697 = vld [vmem:[#allocation8 + $0x160] sm:$0xff]
    %v698 = vld [vmem:[#allocation8 + $0x168] sm:$0xff]
    %v699 = vld [vmem:[#allocation8 + $0x170] sm:$0xff]
    %v700 = vld [vmem:[#allocation8 + $0x178] sm:$0xff]
    %v701 = vld [vmem:[%s4] sm:$0x7]
    %v703 = vperm.slane %v701, 0
    %v704 = vperm.slane %v701, 1
    %v705 = vperm.slane %v701, 2
    %709 = vmatpush.msra.mxu0 %v698
    %710 = vmatpush.msra.mxu0 %v695
    %711 = vmatpush.msra.mxu0 %v692
    %712 = vmatpush.msra.mxu0 %v689
    %713 = vmatpush.msra.mxu0 %v686
    %714 = vmatpush.msra.mxu0 %v683
    %715 = vmatpush.msra.mxu0 %v680
    %716 = vmatpush.msra.mxu0 %v677
    %717 = vmatpush.msra.mxu0 %v674
    %718 = vmatpush.msra.mxu0 %v671
    %719 = vmatpush.msra.mxu0 %v668
    %720 = vmatpush.msra.mxu0 %v665
    %721 = vmatpush.msra.mxu0 %v662
    %722 = vmatpush.msra.mxu0 %v659
    %723 = vmatpush.msra.mxu0 %v656
    %724 = vmatpush.msra.mxu0 %v653
    %725 = vmatmul.f32.gmra.mxu0 %v649
    %v726 = vpop.f32.mrf.mxu0
    %v727 = vadd.f32 %v703, %v726
    %728 = vmatmul.f32.gmra.mxu0 %v650
    %v729 = vpop.f32.mrf.mxu0
    %v730 = vadd.f32 %v703, %v729
    %731 = vmatmul.f32.gmra.mxu0 %v651
    %v732 = vpop.f32.mrf.mxu0
    %v733 = vadd.f32 %v703, %v732
    %734 = vmatmul.f32.gmra.mxu0 %v652
    %v735 = vpop.f32.mrf.mxu0
    %v736 = vadd.f32 %v703, %v735
    %737 = vdwg.mxu0
    %738 = vmatpush.msra.mxu0 %v699
    %739 = vmatpush.msra.mxu0 %v696
    %740 = vmatpush.msra.mxu0 %v693
    %741 = vmatpush.msra.mxu0 %v690
    %742 = vmatpush.msra.mxu0 %v687
    %743 = vmatpush.msra.mxu0 %v684
    %744 = vmatpush.msra.mxu0 %v681
    %745 = vmatpush.msra.mxu0 %v678
    %746 = vmatpush.msra.mxu0 %v675
    %747 = vmatpush.msra.mxu0 %v672
    %748 = vmatpush.msra.mxu0 %v669
    %749 = vmatpush.msra.mxu0 %v666
    %750 = vmatpush.msra.mxu0 %v663
    %751 = vmatpush.msra.mxu0 %v660
    %752 = vmatpush.msra.mxu0 %v657
    %753 = vmatpush.msra.mxu0 %v654
    %754 = vmatmul.f32.gmra.mxu0 %v649
    %v755 = vpop.f32.mrf.mxu0
    %v756 = vadd.f32 %v704, %v755
    %757 = vmatmul.f32.gmra.mxu0 %v650
    %v758 = vpop.f32.mrf.mxu0
    %v759 = vadd.f32 %v704, %v758
    %760 = vmatmul.f32.gmra.mxu0 %v651
    %v761 = vpop.f32.mrf.mxu0
    %v762 = vadd.f32 %v704, %v761
    %763 = vmatmul.f32.gmra.mxu0 %v652
    %v764 = vpop.f32.mrf.mxu0
    %v765 = vadd.f32 %v704, %v764
    %766 = vdwg.mxu0
    %767 = vmatpush.msra.mxu0 %v700
    %768 = vmatpush.msra.mxu0 %v697
    %769 = vmatpush.msra.mxu0 %v694
    %770 = vmatpush.msra.mxu0 %v691
    %771 = vmatpush.msra.mxu0 %v688
    %772 = vmatpush.msra.mxu0 %v685
    %773 = vmatpush.msra.mxu0 %v682
    %774 = vmatpush.msra.mxu0 %v679
    %775 = vmatpush.msra.mxu0 %v676
    %776 = vmatpush.msra.mxu0 %v673
    %777 = vmatpush.msra.mxu0 %v670
    %778 = vmatpush.msra.mxu0 %v667
    %779 = vmatpush.msra.mxu0 %v664
    %780 = vmatpush.msra.mxu0 %v661
    %781 = vmatpush.msra.mxu0 %v658
    %782 = vmatpush.msra.mxu0 %v655
    %783 = vmatmul.f32.gmra.mxu0 %v649
    %v784 = vpop.f32.mrf.mxu0
    %v785 = vadd.f32 %v705, %v784
    %786 = vmatmul.f32.gmra.mxu0 %v650
    %v787 = vpop.f32.mrf.mxu0
    %v788 = vadd.f32 %v705, %v787
    %789 = vmatmul.f32.gmra.mxu0 %v651
    %v790 = vpop.f32.mrf.mxu0
    %v791 = vadd.f32 %v705, %v790
    %792 = vmatmul.f32.gmra.mxu0 %v652
    %v793 = vpop.f32.mrf.mxu0
    %v794 = vadd.f32 %v705, %v793
    %795 = vdwg.mxu0
    %v796 = vadd.f32 %v727, %v449
    %v797 = vadd.f32 %v730, %v452
    %v798 = vadd.f32 %v733, %v455
    %v799 = vadd.f32 %v736, %v458
    %v800 = vxor.u32 %v796, 2147483648
    %v801 = vxor.u32 %v797, 2147483648
    %v802 = vxor.u32 %v798, 2147483648
    %v803 = vxor.u32 %v799, 2147483648
    %v804 = vmul.f32 %v800, 1.442695
    %v805 = vpow.pop %v804
    %v806 = vmul.f32 %v801, 1.442695
    %v807 = vpow.pop %v806
    %v808 = vmul.f32 %v802, 1.442695
    %v809 = vpow.pop %v808
    %v810 = vmul.f32 %v803, 1.442695
    %v811 = vpow.pop %v810
    %v812 = vadd.f32 %v805, 1.0
    %v813 = vadd.f32 %v807, 1.0
    %v814 = vadd.f32 %v809, 1.0
    %v815 = vadd.f32 %v811, 1.0
    %v816 = vrcp.pop %v812
    %v817 = vmul.f32 %v812, %v816
    %v818 = vsub.f32 1.0, %v817
    %v819 = vmul.f32 %v816, %v818
    %v820 = vadd.f32 %v816, %v819
    %vm821 = vweird.f32 %v812
    %vm822 = vweird.f32 %v816
    %vm823 = vmor %vm821, %vm822
    %v824 = vsel %vm823, %v816, %v820
    %v825 = vand.u32 2147483647, %v812
    %vm826 = vcmp.eq.f32.partialorder %v825, 8.507059e+37
    %v827 = vand.u32 %v812, 2147483648
    %v828 = vor.u32 1.1754944e-38, %v827
    %v829 = vsel %vm826, %v828, %v824
    %v830 = vmul.f32 1.0, %v829
    %v831 = vrcp.pop %v813
    %v832 = vmul.f32 %v813, %v831
    %v833 = vsub.f32 1.0, %v832
    %v834 = vmul.f32 %v831, %v833
    %v835 = vadd.f32 %v831, %v834
    %vm836 = vweird.f32 %v813
    %vm837 = vweird.f32 %v831
    %vm838 = vmor %vm836, %vm837
    %v839 = vsel %vm838, %v831, %v835
    %v840 = vand.u32 2147483647, %v813
    %vm841 = vcmp.eq.f32.partialorder %v840, 8.507059e+37
    %v842 = vand.u32 %v813, 2147483648
    %v843 = vor.u32 1.1754944e-38, %v842
    %v844 = vsel %vm841, %v843, %v839
    %v845 = vmul.f32 1.0, %v844
    %v846 = vrcp.pop %v814
    %v847 = vmul.f32 %v814, %v846
    %v848 = vsub.f32 1.0, %v847
    %v849 = vmul.f32 %v846, %v848
    %v850 = vadd.f32 %v846, %v849
    %vm851 = vweird.f32 %v814
    %vm852 = vweird.f32 %v846
    %vm853 = vmor %vm851, %vm852
    %v854 = vsel %vm853, %v846, %v850
    %v855 = vand.u32 2147483647, %v814
    %vm856 = vcmp.eq.f32.partialorder %v855, 8.507059e+37
    %v857 = vand.u32 %v814, 2147483648
    %v858 = vor.u32 1.1754944e-38, %v857
    %v859 = vsel %vm856, %v858, %v854
    %v860 = vmul.f32 1.0, %v859
    %v861 = vrcp.pop %v815
    %v862 = vmul.f32 %v815, %v861
    %v863 = vsub.f32 1.0, %v862
    %v864 = vmul.f32 %v861, %v863
    %v865 = vadd.f32 %v861, %v864
    %vm866 = vweird.f32 %v815
    %vm867 = vweird.f32 %v861
    %vm868 = vmor %vm866, %vm867
    %v869 = vsel %vm868, %v861, %v865
    %v870 = vand.u32 2147483647, %v815
    %vm871 = vcmp.eq.f32.partialorder %v870, 8.507059e+37
    %v872 = vand.u32 %v815, 2147483648
    %v873 = vor.u32 1.1754944e-38, %v872
    %v874 = vsel %vm871, %v873, %v869
    %v875 = vmul.f32 1.0, %v874
    %v876 = vadd.f32 %v756, %v450
    %v877 = vadd.f32 %v759, %v453
    %v878 = vadd.f32 %v762, %v456
    %v879 = vadd.f32 %v765, %v459
    %v880 = vxor.u32 %v876, 2147483648
    %v881 = vxor.u32 %v877, 2147483648
    %v882 = vxor.u32 %v878, 2147483648
    %v883 = vxor.u32 %v879, 2147483648
    %v884 = vmul.f32 %v880, 1.442695
    %v885 = vpow.pop %v884
    %v886 = vmul.f32 %v881, 1.442695
    %v887 = vpow.pop %v886
    %v888 = vmul.f32 %v882, 1.442695
    %v889 = vpow.pop %v888
    %v890 = vmul.f32 %v883, 1.442695
    %v891 = vpow.pop %v890
    %v892 = vadd.f32 %v885, 1.0
    %v893 = vadd.f32 %v887, 1.0
    %v894 = vadd.f32 %v889, 1.0
    %v895 = vadd.f32 %v891, 1.0
    %v896 = vrcp.pop %v892
    %v897 = vmul.f32 %v892, %v896
    %v898 = vsub.f32 1.0, %v897
    %v899 = vmul.f32 %v896, %v898
    %v900 = vadd.f32 %v896, %v899
    %vm901 = vweird.f32 %v892
    %vm902 = vweird.f32 %v896
    %vm903 = vmor %vm901, %vm902
    %v904 = vsel %vm903, %v896, %v900
    %v905 = vand.u32 2147483647, %v892
    %vm906 = vcmp.eq.f32.partialorder %v905, 8.507059e+37
    %v907 = vand.u32 %v892, 2147483648
    %v908 = vor.u32 1.1754944e-38, %v907
    %v909 = vsel %vm906, %v908, %v904
    %v910 = vmul.f32 1.0, %v909
    %v911 = vrcp.pop %v893
    %v912 = vmul.f32 %v893, %v911
    %v913 = vsub.f32 1.0, %v912
    %v914 = vmul.f32 %v911, %v913
    %v915 = vadd.f32 %v911, %v914
    %vm916 = vweird.f32 %v893
    %vm917 = vweird.f32 %v911
    %vm918 = vmor %vm916, %vm917
    %v919 = vsel %vm918, %v911, %v915
    %v920 = vand.u32 2147483647, %v893
    %vm921 = vcmp.eq.f32.partialorder %v920, 8.507059e+37
    %v922 = vand.u32 %v893, 2147483648
    %v923 = vor.u32 1.1754944e-38, %v922
    %v924 = vsel %vm921, %v923, %v919
    %v925 = vmul.f32 1.0, %v924
    %v926 = vrcp.pop %v894
    %v927 = vmul.f32 %v894, %v926
    %v928 = vsub.f32 1.0, %v927
    %v929 = vmul.f32 %v926, %v928
    %v930 = vadd.f32 %v926, %v929
    %vm931 = vweird.f32 %v894
    %vm932 = vweird.f32 %v926
    %vm933 = vmor %vm931, %vm932
    %v934 = vsel %vm933, %v926, %v930
    %v935 = vand.u32 2147483647, %v894
    %vm936 = vcmp.eq.f32.partialorder %v935, 8.507059e+37
    %v937 = vand.u32 %v894, 2147483648
    %v938 = vor.u32 1.1754944e-38, %v937
    %v939 = vsel %vm936, %v938, %v934
    %v940 = vmul.f32 1.0, %v939
    %v941 = vrcp.pop %v895
    %v942 = vmul.f32 %v895, %v941
    %v943 = vsub.f32 1.0, %v942
    %v944 = vmul.f32 %v941, %v943
    %v945 = vadd.f32 %v941, %v944
    %vm946 = vweird.f32 %v895
    %vm947 = vweird.f32 %v941
    %vm948 = vmor %vm946, %vm947
    %v949 = vsel %vm948, %v941, %v945
    %v950 = vand.u32 2147483647, %v895
    %vm951 = vcmp.eq.f32.partialorder %v950, 8.507059e+37
    %v952 = vand.u32 %v895, 2147483648
    %v953 = vor.u32 1.1754944e-38, %v952
    %v954 = vsel %vm951, %v953, %v949
    %v955 = vmul.f32 1.0, %v954
    %v956 = vmul.f32 %v830, %v451
    %v957 = vmul.f32 %v845, %v454
    %v958 = vmul.f32 %v860, %v457
    %v959 = vmul.f32 %v875, %v460
    %v960 = vadd.f32 %v785, %v956
    %v961 = vadd.f32 %v788, %v957
    %v962 = vadd.f32 %v791, %v958
    %v963 = vadd.f32 %v794, %v959
    %v964 = vtanh.pop %v960
    %v965 = vtanh.pop %v961
    %v966 = vtanh.pop %v962
    %v967 = vtanh.pop %v963
    %v968 = vsub.f32 %v122, %v964
    %v969 = vsub.f32 %v123, %v965
    %v970 = vsub.f32 %v124, %v966
    %v971 = vsub.f32 %v125, %v967
    %v972 = vmul.f32 %v910, %v968
    %v973 = vmul.f32 %v925, %v969
    %v974 = vmul.f32 %v940, %v970
    %v975 = vmul.f32 %v955, %v971
    %v976 = vadd.f32 %v964, %v972
    %v977 = vadd.f32 %v965, %v973
    %v978 = vadd.f32 %v966, %v974
    %v979 = vadd.f32 %v967, %v975
    %v980 = vld [vmem:[#allocation11] sm:$0xff]
    %v981 = vld [vmem:[#allocation11 + $0x8] sm:$0xff]
    %v982 = vld [vmem:[#allocation11 + $0x10] sm:$0xff]
    %v983 = vld [vmem:[#allocation11 + $0x18] sm:$0xff]
    %v984 = vld [vmem:[#allocation11 + $0x20] sm:$0xff]
    %v985 = vld [vmem:[#allocation11 + $0x28] sm:$0xff]
    %v986 = vld [vmem:[#allocation11 + $0x30] sm:$0xff]
    %v987 = vld [vmem:[#allocation11 + $0x38] sm:$0xff]
    %v988 = vld [vmem:[#allocation11 + $0x40] sm:$0xff]
    %v989 = vld [vmem:[#allocation11 + $0x48] sm:$0xff]
    %v990 = vld [vmem:[#allocation11 + $0x50] sm:$0xff]
    %v991 = vld [vmem:[#allocation11 + $0x58] sm:$0xff]
    %v992 = vld [vmem:[#allocation11 + $0x60] sm:$0xff]
    %v993 = vld [vmem:[#allocation11 + $0x68] sm:$0xff]
    %v994 = vld [vmem:[#allocation11 + $0x70] sm:$0xff]
    %v995 = vld [vmem:[#allocation11 + $0x78] sm:$0xff]
    %v996 = vld [vmem:[%s7] sm:$0x1]
    %v998 = vperm.slane %v996, 0
    %1000 = vmatpush.msra.mxu0 %v995
    %1001 = vmatpush.msra.mxu0 %v994
    %1002 = vmatpush.msra.mxu0 %v993
    %1003 = vmatpush.msra.mxu0 %v992
    %1004 = vmatpush.msra.mxu0 %v991
    %1005 = vmatpush.msra.mxu0 %v990
    %1006 = vmatpush.msra.mxu0 %v989
    %1007 = vmatpush.msra.mxu0 %v988
    %1008 = vmatpush.msra.mxu0 %v987
    %1009 = vmatpush.msra.mxu0 %v986
    %1010 = vmatpush.msra.mxu0 %v985
    %1011 = vmatpush.msra.mxu0 %v984
    %1012 = vmatpush.msra.mxu0 %v983
    %1013 = vmatpush.msra.mxu0 %v982
    %1014 = vmatpush.msra.mxu0 %v981
    %1015 = vmatpush.msra.mxu0 %v980
    %1016 = vmatmul.f32.gmra.mxu0 %v976
    %v1017 = vpop.f32.mrf.mxu0
    %v1018 = vadd.f32 %v998, %v1017
    %1019 = vmatmul.f32.gmra.mxu0 %v977
    %v1020 = vpop.f32.mrf.mxu0
    %v1021 = vadd.f32 %v998, %v1020
    %1022 = vmatmul.f32.gmra.mxu0 %v978
    %v1023 = vpop.f32.mrf.mxu0
    %v1024 = vadd.f32 %v998, %v1023
    %1025 = vmatmul.f32.gmra.mxu0 %v979
    %v1026 = vpop.f32.mrf.mxu0
    %v1027 = vadd.f32 %v998, %v1026
    %1028 = vdwg.mxu0
    %1029 = vst [vmem:[#allocation13] sm:$0xff] %v1018
    %1030 = vst [vmem:[#allocation13 + $0x8] sm:$0xff] %v1021
    %1031 = vst [vmem:[#allocation13 + $0x10] sm:$0xff] %v1024
    %1032 = vst [vmem:[#allocation13 + $0x18] sm:$0xff] %v1027
    // Predicated region
    $region58: #{tpu_custom_call.1} parent=1 // pred_check
      _
    $region59: #{tpu_custom_call.1} parent=1 // pred_check_branch
      %1034 = sbr.rel (0) target = $region61
    $region60: #{tpu_custom_call.1} parent=1 // pred_region
      %1036 = vsyncadd [#allocation4], 0
      %s1037 = sshll.u32 [#allocation13], 4
      %s1038 = int_to_ptr.vmem [resolvable:$true] %s1037
      %s1039 = sshll.u32 %s8, 4
      %s1040 = int_to_ptr.hbm [resolvable:$true] %s1039
      %1045 = dma.vmem_to_hbm [thread:$0]  %s1038, 512, %s1040, [#allocation4], 128, 128, 8
    $region61: #{tpu_custom_call.1} parent=1 // pred_fallthru
      _
    // Predicated region
    $region62: #{tpu_custom_call.1} parent=1 // pred_check
      _
    $region63: #{tpu_custom_call.1} parent=1 // pred_check_branch
      %1047 = sbr.rel (0) target = $region65
    $region64: #{tpu_custom_call.1} parent=1 // pred_region
      %1049 = dma.done [#allocation4], 512
    $region65: #{tpu_custom_call.1} parent=1 // pred_fallthru
      _
    %1050 = vsyncpa [#allocation3], 1
    %1051 = vsyncpa [#allocation6], 1
    %1052 = vsyncpa [#allocation9], 1
    %1053 = vsyncpa [#allocation12], 1
    %1054 = vsyncpa [#allocation4], 1

</llo_original>
